<compile_context>
chip_gen: v6e
topology: v6e:2x2x1
jax: 0.10.0
libtpu: 0.0.40
codegen_flags: <defaults>
</compile_context>

<pallas_src>
import math

import jax
import jax.numpy as jnp
from jax.experimental import pallas as pl
from jax.experimental.pallas import tpu as pltpu


def critic_kernel(obs_ref, w1_ref, b1_ref, w2_ref, b2_ref, w3_ref, b3_ref,
                  out_ref):
    """One batch tile: 2x (MXU matmul + f32 bias + ReLU) + lane-dense VPU/XLU head."""
    # Optional bf16 operands: cast the already-loaded tile here (no extra HBM
    # pass); this is a no-op when the weights are f32.
    x = obs_ref[...].astype(w1_ref.dtype)

    # Layer 1: MXU matmul with f32 accumulation; bias + ReLU on the VPU in f32.
    # (Pass precision=jax.lax.Precision.HIGHEST to the dots if bit-exact f32
    # parity with a CPU reference is ever required; default passes 1e-5 here.)
    h1 = jnp.dot(x, w1_ref[...], preferred_element_type=jnp.float32)
    h1 = jnp.maximum(h1 + b1_ref[...], 0.0)

    # Layer 2: cast activations back to the matmul operand dtype (no-op for f32).
    h2 = jnp.dot(h1.astype(w2_ref.dtype), w2_ref[...],
                 preferred_element_type=jnp.float32)
    h2 = jnp.maximum(h2 + b2_ref[...], 0.0)

    # Head (fc2 -> 1): transpose h2 on the XLU so the batch lands on the lane
    # axis, multiply by the (fc2, 1) weight column on the VPU and reduce over
    # sublanes.  Result is a lane-dense (1, tm) row -> unmasked stores, and no
    # single-output-lane MXU matmul.
    h2t = h2.T                                               # (fc2, tm)
    v = jnp.sum(h2t * w3_ref[...], axis=0, keepdims=True)    # (1, tm), f32
    out_ref[0] = v + b3_ref[0, 0]


def _round_up(x, m):
    return (x + m - 1) // m * m


def critic_forward(obs, params, *, block_rows=2048,
                   compute_dtype=jnp.float32, core_parallel=False):
    """Batched critic value: (batch, input_dims) -> (batch, 1) float32."""
    w1, b1, w2, b2, w3, b3 = params
    batch, input_dims = obs.shape
    fc1 = w1.shape[1]
    fc2 = w2.shape[1]

    # Row tile: multiple of 8 (sublanes), large by default so per-grid-step
    # overhead and tiny DMAs stop dominating; small batches collapse to a
    # single grid step.  Even at tm=8192 the double-buffered obs tile plus the
    # resident weights and f32 intermediates are a few MiB -- far under every
    # generation's VMEM, so no vmem_limit override is needed.
    tm = min(block_rows, _round_up(batch, 8))
    num_tiles = pl.cdiv(batch, tm)

    # No full-array padding pass: Pallas clips the ragged last block's DMA and
    # the garbage rows are sliced off below.  Only a tiny (<8 row) pad remains
    # for batches smaller than one tile that are not a multiple of 8.
    if batch < tm:
        obs = jnp.pad(obs, ((0, tm - batch), (0, 0)))

    # Optional bf16 matmul operands: cast only the tiny resident weights here;
    # obs stays f32 in HBM and is cast inside the kernel.  Biases and the f32
    # head (w3/b3) are untouched.
    w1_c = w1.astype(compute_dtype)
    w2_c = w2.astype(compute_dtype)

    resident = lambda i: (0, 0)   # same block every grid step -> stays in VMEM
    # TODO(synk): if fc1/fc2 ever scale up, single-buffer the resident weight
    # specs (pipeline_mode=pl.Buffered(1)) and/or pad feature dims to 128 or
    # stack several critic heads along the lane axis for lane-dense matmuls.

    batch_axis = pltpu.CORE_PARALLEL if core_parallel else "parallel"

    out = pl.pallas_call(
        critic_kernel,
        out_shape=jax.ShapeDtypeStruct((num_tiles, 1, tm), jnp.float32),
        grid_spec=pltpu.PrefetchScalarGridSpec(
            num_scalar_prefetch=0,
            grid=(num_tiles,),
            in_specs=[
                pl.BlockSpec((tm, input_dims), lambda i: (i, 0)),   # obs tile
                pl.BlockSpec((input_dims, fc1), resident),          # W1
                pl.BlockSpec((1, fc1), resident),                   # b1
                pl.BlockSpec((fc1, fc2), resident),                 # W2
                pl.BlockSpec((1, fc2), resident),                   # b2
                pl.BlockSpec((fc2, 1), resident),                   # W3 column
                pl.BlockSpec(memory_space=pltpu.MemorySpace.SMEM),  # b3 scalar
            ],
            out_specs=pl.BlockSpec((1, 1, tm), lambda i: (i, 0, 0)),
        ),
        compiler_params=pltpu.CompilerParams(
            # Independent batch tiles; core_parallel=True shards the grid
            # across v7x's two TensorCores.
            dimension_semantics=(batch_axis,),
        ),
    )(obs, w1_c, b1, w2_c, b2, w3, b3)

    # (num_tiles, 1, tm) lane-dense slab -> (batch, 1); row-major flatten, then
    # drop the ragged-tile garbage rows.
    return out.reshape(num_tiles * tm)[:batch].reshape(batch, 1)


def init_critic_params(key, input_dims, fc1_dims, fc2_dims):
    """Deterministic init mimicking nn.Linear default (U[-1/sqrt(fan_in), +])."""
    keys = jax.random.split(key, 6)

    def linear(kw, kb, fan_in, fan_out):
        bound = 1.0 / math.sqrt(fan_in)
        # stored transposed: (in, out)
        w = jax.random.uniform(kw, (fan_in, fan_out), jnp.float32, -bound, bound)
        b = jax.random.uniform(kb, (1, fan_out), jnp.float32, -bound, bound)
        return w, b

    w1, b1 = linear(keys[0], keys[1], input_dims, fc1_dims)
    w2, b2 = linear(keys[2], keys[3], fc1_dims, fc2_dims)
    # Final layer kept as a (fc2, 1) column so the kernel's transposed head can
    # broadcast it along lanes and reduce over sublanes.
    w3, b3 = linear(keys[4], keys[5], fc2_dims, 1)
    return (w1, b1, w2, b2, w3, b3)


if __name__ == "__main__":
    key = jax.random.PRNGKey(0)
    k_obs, k_params = jax.random.split(key)

    batch = 300         # not a multiple of the tile -> exercises the ragged last block
    input_dims = 16     # small observation vector
    fc1_dims = 32
    fc2_dims = 32

    obs = jax.random.normal(k_obs, (batch, input_dims), dtype=jnp.float32)
    params = init_critic_params(k_params, input_dims, fc1_dims, fc2_dims)

    # Pure-JAX reference of the fused forward pass.
    w1, b1, w2, b2, w3, b3 = params
    ref = jnp.maximum(obs @ w1 + b1, 0.0)
    ref = jnp.maximum(ref @ w2 + b2, 0.0)
    ref = ref @ w3 + b3                                      # (batch, 1)

    # Small block_rows so the test exercises the multi-step batch grid and the
    # ragged last tile; production use keeps the default (2048).
    value = jax.block_until_ready(critic_forward(obs, params, block_rows=128))
    assert value.shape == (batch, 1)
    assert jnp.allclose(value, ref, atol=1e-5, rtol=1e-5)

    # Small-batch path: single grid step, only a <8-row pad.
    v_small = jax.block_until_ready(critic_forward(obs[:44], params))
    assert v_small.shape == (44, 1)
    assert jnp.allclose(v_small, ref[:44], atol=1e-5, rtol=1e-5)

    # bf16-operand path (f32 accumulate, f32 bias/ReLU/head): looser tolerance.
    v_bf16 = jax.block_until_ready(
        critic_forward(obs, params, block_rows=128, compute_dtype=jnp.bfloat16))
    assert v_bf16.shape == (batch, 1)
    assert jnp.allclose(v_bf16, ref, atol=2e-1, rtol=1e-1)

    print("KERNEL_OK")
</pallas_src>

<mosaic_0001>
module attributes {stable_mosaic.version = 11 : i64} {
  func.func @critic_kernel(%arg0: i32, %arg1: memref<128x16xf32, #tpu.memory_space<vmem>>, %arg2: memref<16x32xf32, #tpu.memory_space<vmem>>, %arg3: memref<1x32xf32, #tpu.memory_space<vmem>>, %arg4: memref<32x32xf32, #tpu.memory_space<vmem>>, %arg5: memref<1x32xf32, #tpu.memory_space<vmem>>, %arg6: memref<32x1xf32, #tpu.memory_space<vmem>>, %arg7: memref<1x1xf32, #tpu.memory_space<smem>>, %arg8: memref<1x1x128xf32, #tpu.memory_space<vmem>>) attributes {dimension_semantics = [#tpu.dimension_semantics<parallel>], iteration_bounds = array<i64: 3>, scalar_prefetch = 0 : i64, scratch_operands = 0 : i64, tpu.core_type = #tpu.core_type<tc>, window_params = [{transform_indices = @transform_0, window_bounds = array<i64: 128, 16>}, {pipeline_mode = #tpu.pipeline_mode<synchronous>, transform_indices = @transform_1, window_bounds = array<i64: 16, 32>}, {pipeline_mode = #tpu.pipeline_mode<synchronous>, transform_indices = @transform_2, window_bounds = array<i64: 1, 32>}, {pipeline_mode = #tpu.pipeline_mode<synchronous>, transform_indices = @transform_3, window_bounds = array<i64: 32, 32>}, {pipeline_mode = #tpu.pipeline_mode<synchronous>, transform_indices = @transform_4, window_bounds = array<i64: 1, 32>}, {pipeline_mode = #tpu.pipeline_mode<synchronous>, transform_indices = @transform_5, window_bounds = array<i64: 32, 1>}, {transform_indices = @transform_6, window_bounds = array<i64: 1, 1>}, {transform_indices = @transform_7, window_bounds = array<i64: 1, 1, 128>}]} {
    %c0 = arith.constant 0 : index
    %c0_0 = arith.constant 0 : index
    %0 = vector.load %arg1[%c0, %c0_0] : memref<128x16xf32, #tpu.memory_space<vmem>>, vector<128x16xf32>
    %c0_1 = arith.constant 0 : index
    %c0_2 = arith.constant 0 : index
    %1 = vector.load %arg2[%c0_1, %c0_2] : memref<16x32xf32, #tpu.memory_space<vmem>>, vector<16x32xf32>
    %cst = arith.constant dense<0.000000e+00> : vector<128x32xf32>
    %2 = tpu.matmul %0, %1, %cst {dimension_numbers = #tpu.dot_dimension_numbers<[1], [0], [0], [1], [0, 0, 1, 1], [], []>} : vector<128x16xf32>, vector<16x32xf32>, vector<128x32xf32> -> vector<128x32xf32>
    %c0_3 = arith.constant 0 : index
    %c0_4 = arith.constant 0 : index
    %3 = vector.load %arg3[%c0_3, %c0_4] : memref<1x32xf32, #tpu.memory_space<vmem>>, vector<1x32xf32>
    %4 = vector.broadcast %3 : vector<1x32xf32> to vector<128x32xf32>
    %5 = arith.addf %2, %4 : vector<128x32xf32>
    %cst_5 = arith.constant 0.000000e+00 : f32
    %6 = vector.broadcast %cst_5 : f32 to vector<128x32xf32>
    %7 = arith.maximumf %5, %6 : vector<128x32xf32>
    %c0_6 = arith.constant 0 : index
    %c0_7 = arith.constant 0 : index
    %8 = vector.load %arg4[%c0_6, %c0_7] : memref<32x32xf32, #tpu.memory_space<vmem>>, vector<32x32xf32>
    %cst_8 = arith.constant dense<0.000000e+00> : vector<128x32xf32>
    %9 = tpu.matmul %7, %8, %cst_8 {dimension_numbers = #tpu.dot_dimension_numbers<[1], [0], [0], [1], [0, 0, 1, 1], [], []>} : vector<128x32xf32>, vector<32x32xf32>, vector<128x32xf32> -> vector<128x32xf32>
    %c0_9 = arith.constant 0 : index
    %c0_10 = arith.constant 0 : index
    %10 = vector.load %arg5[%c0_9, %c0_10] : memref<1x32xf32, #tpu.memory_space<vmem>>, vector<1x32xf32>
    %11 = vector.broadcast %10 : vector<1x32xf32> to vector<128x32xf32>
    %12 = arith.addf %9, %11 : vector<128x32xf32>
    %cst_11 = arith.constant 0.000000e+00 : f32
    %13 = vector.broadcast %cst_11 : f32 to vector<128x32xf32>
    %14 = arith.maximumf %12, %13 : vector<128x32xf32>
    %15 = tpu.transpose %14, [1, 0] : vector<128x32xf32> -> vector<32x128xf32>
    %c0_12 = arith.constant 0 : index
    %c0_13 = arith.constant 0 : index
    %16 = vector.load %arg6[%c0_12, %c0_13] : memref<32x1xf32, #tpu.memory_space<vmem>>, vector<32x1xf32>
    %17 = vector.broadcast %16 : vector<32x1xf32> to vector<32x128xf32>
    %18 = arith.mulf %15, %17 : vector<32x128xf32>
    %cst_14 = arith.constant dense<0.000000e+00> : vector<128xf32>
    %19 = vector.multi_reduction <add>, %18, %cst_14 [0] : vector<32x128xf32> to vector<128xf32>
    %20 = vector.shape_cast %19 : vector<128xf32> to vector<1x128xf32>
    %c0_15 = arith.constant 0 : index
    %c0_16 = arith.constant 0 : index
    %21 = memref.load %arg7[%c0_15, %c0_16] : memref<1x1xf32, #tpu.memory_space<smem>>
    %22 = vector.broadcast %21 : f32 to vector<1x128xf32>
    %23 = arith.addf %20, %22 : vector<1x128xf32>
    %c0_17 = arith.constant 0 : index
    %c0_18 = arith.constant 0 : index
    %c0_19 = arith.constant 0 : index
    %24 = vector.load %arg8[%c0_17, %c0_18, %c0_19] : memref<1x1x128xf32, #tpu.memory_space<vmem>>, vector<1x1x128xf32>
    %25 = vector.shape_cast %24 : vector<1x1x128xf32> to vector<1x128xf32>
    %26 = vector.shape_cast %23 : vector<1x128xf32> to vector<1x1x128xf32>
    tpu.vector_store %arg8[%c0_17, %c0_18, %c0_19], %26 {strides = array<i32>} : memref<1x1x128xf32, #tpu.memory_space<vmem>>, vector<1x1x128xf32>,
    return
  }
  func.func @transform_0(%arg0: i32) -> (i32, i32) {
    %c0_i32 = arith.constant 0 : i32
    %c0_i32_0 = arith.constant 0 : i32
    return %arg0, %c0_i32 : i32, i32
  }
  func.func @transform_1(%arg0: i32) -> (i32, i32) {
    %c0_i32 = arith.constant 0 : i32
    %c0_i32_0 = arith.constant 0 : i32
    %c0_i32_1 = arith.constant 0 : i32
    return %c0_i32, %c0_i32_0 : i32, i32
  }
  func.func @transform_2(%arg0: i32) -> (i32, i32) {
    %c0_i32 = arith.constant 0 : i32
    %c0_i32_0 = arith.constant 0 : i32
    %c0_i32_1 = arith.constant 0 : i32
    return %c0_i32, %c0_i32_0 : i32, i32
  }
  func.func @transform_3(%arg0: i32) -> (i32, i32) {
    %c0_i32 = arith.constant 0 : i32
    %c0_i32_0 = arith.constant 0 : i32
    %c0_i32_1 = arith.constant 0 : i32
    return %c0_i32, %c0_i32_0 : i32, i32
  }
  func.func @transform_4(%arg0: i32) -> (i32, i32) {
    %c0_i32 = arith.constant 0 : i32
    %c0_i32_0 = arith.constant 0 : i32
    %c0_i32_1 = arith.constant 0 : i32
    return %c0_i32, %c0_i32_0 : i32, i32
  }
  func.func @transform_5(%arg0: i32) -> (i32, i32) {
    %c0_i32 = arith.constant 0 : i32
    %c0_i32_0 = arith.constant 0 : i32
    %c0_i32_1 = arith.constant 0 : i32
    return %c0_i32, %c0_i32_0 : i32, i32
  }
  func.func @transform_6(%arg0: i32) -> (i32, i32) {
    %c0_i32 = arith.constant 0 : i32
    %c0_i32_0 = arith.constant 0 : i32
    %c0_i32_1 = arith.constant 0 : i32
    return %c0_i32, %c0_i32_0 : i32, i32
  }
  func.func @transform_7(%arg0: i32) -> (i32, i32, i32) {
    %c0_i32 = arith.constant 0 : i32
    %c0_i32_0 = arith.constant 0 : i32
    %c0_i32_1 = arith.constant 0 : i32
    return %arg0, %c0_i32, %c0_i32_0 : i32, i32, i32
  }
}

</mosaic_0001>

<llo_original>
// kernel: tpu_custom_call.1
$region0: #{tpu_custom_call.1}
  #allocation0 [shape = 'u32[]', space=smem, size = 0x4, offset = 0x4, fixed_abs, tag = 'smem constant byte address 0x4 - core index']
  #allocation1 [shape = 'u32[144,128]{1,0:T(1,128)}', space=vmem, size = 0x12000, scoped, tag = 'internal scratch']
  #allocation2 [shape = 'f32[1,1]{1,0:T(1,128)S(6)}', space=smem, size = 0x200, scoped, tag = 'scoped memory for tpu_custom_call.1']
  %s0 = inlined_call_operand.vmem [shape: f32[300,16], index: 0, kind: input, shape index: {}]
  %s1 = inlined_call_operand.vmem [shape: f32[16,32], index: 1, kind: input, shape index: {}]
  %s2 = inlined_call_operand.vmem [shape: f32[1,32], index: 2, kind: input, shape index: {}]
  %s3 = inlined_call_operand.vmem [shape: f32[32,32], index: 3, kind: input, shape index: {}]
  %s4 = inlined_call_operand.vmem [shape: f32[1,32], index: 4, kind: input, shape index: {}]
  %s5 = inlined_call_operand.vmem [shape: f32[32,1], index: 5, kind: input, shape index: {}]
  %s6 = inlined_call_operand.<no memory space> [shape: f32[1,1], index: 6, kind: input, shape index: {}]
  %s7 = inlined_call_operand.hbm [shape: f32[3,1,128], index: 7, kind: output, shape index: {}]
  %s8 = sld [smem:[#allocation0]]
  $region61: #{tpu_custom_call.1} parent=0
    _
  %s10 = ssub.s32 1, %s8
  %s11 = scalar_select 0, %s10, %s8
  %12 = sst [smem:[#allocation2]] %s6
  $region1: #{tpu_custom_call.1} parent=0
    #allocation3 [shape = 'u8[1024]{0}', space=vmem, size = 0x400, scoped, tag = 'output window, operand 0']
    #allocation4 [shape = 's32[2]{0}', space=sflag, size = 0x8, scoped, tag = 'scoped memory for tpu_custom_call.1']
    %13 = vsyncpa [#allocation4], 0
    %s14 = scalar_lea.sflag [#allocation4], 1
    %15 = vsyncpa %s14, 0
    loop: start=0, step=1, limit=5
    $region2: #{tpu_custom_call.1} parent=1 // loop_pre_header
      _
    $region3: #{tpu_custom_call.1} parent=1 // loop_header
      %s17 = sphi 0, %s21
      %p18 = scmp.ge.s32.totalorder %s17, 5
      %s27 = sphi 0, %s29
      %s30 = sphi 0, %s27
      %s31 = sphi 0, %s30
      %s47 = sphi 0, %s31
      %s51 = sphi 0, %s51
      %s53 = sphi 0, %s51
      %s54 = sphi 0, %s53
      %s68 = sphi 0, %s54
      %s72 = sphi 0, %s72
      %s74 = sphi 0, %s72
      %s75 = sphi 0, %s74
      %s89 = sphi 0, %s75
      %s93 = sphi 0, %s93
      %s95 = sphi 0, %s93
      %s96 = sphi 0, %s95
      %s110 = sphi 0, %s96
      %s114 = sphi 0, %s114
      %s116 = sphi 0, %s114
      %s117 = sphi 0, %s116
      %s131 = sphi 0, %s117
      %s135 = sphi 0, %s135
      %s137 = sphi 0, %s135
      %s138 = sphi 0, %s137
      %s152 = sphi 0, %s138
      %s156 = sphi 0, %s156
      %s158 = sphi 0, %s156
      %s159 = sphi 0, %s158
      %s173 = sphi 0, %s159
      %s179 = sphi 0, %s181
      %s182 = sphi 0, %s179
      %s183 = sphi 0, %s182
      %s199 = sphi 0, %s183
    $region4: #{tpu_custom_call.1} parent=1 // loop_header_branch
      %20 = sbr.rel (%p18) target = $region8
    $region5: #{tpu_custom_call.1} parent=1 // loop_body
      %s22 = ssub.s32 %s17, 1
      %s23 = ssub.s32 %s17, 2
      %s24 = sadd.s32 %s17, 1
      %s25 = ssub.s32 %s17, %s24
      %p26 = scmp.eq.s32.totalorder %s25, 0
      %s28 = sadd.s32 %s27, 1
      %s29 = scalar_select %p26, %s27, %s28
      %p32 = pneg %p26
      %p33 = scmp.eq.s32.totalorder %s17, 2
      %p34 = por %p32, %p33
      %p35 = scmp.ne.s32.totalorder %s27, %s30
      %p36 = scmp.eq.s32.totalorder %s17, 0
      %p37 = por %p35, %p36
      %p38 = scmp.ne.s32.totalorder %s27, %s30
      %p39 = scmp.eq.s32.totalorder %s22, 2
      %p40 = por %p38, %p39
      %p41 = scmp.ne.s32.totalorder %s30, %s31
      %p42 = scmp.eq.s32.totalorder %s22, 0
      %p43 = por %p41, %p42
      %p44 = scmp.ne.s32.totalorder %s30, %s31
      %p45 = scmp.eq.s32.totalorder %s23, 2
      %p46 = por %p44, %p45
      %p48 = scmp.ne.s32.totalorder %s31, %s47
      %p49 = scmp.eq.s32.totalorder %s23, 0
      %p50 = por %p48, %p49
      %s52 = sadd.s32 %s51, 1
      %p55 = scmp.eq.s32.totalorder %s17, 2
      %p56 = scmp.ne.s32.totalorder %s51, %s53
      %p57 = scmp.eq.s32.totalorder %s17, 0
      %p58 = por %p56, %p57
      %p59 = scmp.ne.s32.totalorder %s51, %s53
      %p60 = scmp.eq.s32.totalorder %s22, 2
      %p61 = por %p59, %p60
      %p62 = scmp.ne.s32.totalorder %s53, %s54
      %p63 = scmp.eq.s32.totalorder %s22, 0
      %p64 = por %p62, %p63
      %p65 = scmp.ne.s32.totalorder %s53, %s54
      %p66 = scmp.eq.s32.totalorder %s23, 2
      %p67 = por %p65, %p66
      %p69 = scmp.ne.s32.totalorder %s54, %s68
      %p70 = scmp.eq.s32.totalorder %s23, 0
      %p71 = por %p69, %p70
      %s73 = sadd.s32 %s72, 1
      %p76 = scmp.eq.s32.totalorder %s17, 2
      %p77 = scmp.ne.s32.totalorder %s72, %s74
      %p78 = scmp.eq.s32.totalorder %s17, 0
      %p79 = por %p77, %p78
      %p80 = scmp.ne.s32.totalorder %s72, %s74
      %p81 = scmp.eq.s32.totalorder %s22, 2
      %p82 = por %p80, %p81
      %p83 = scmp.ne.s32.totalorder %s74, %s75
      %p84 = scmp.eq.s32.totalorder %s22, 0
      %p85 = por %p83, %p84
      %p86 = scmp.ne.s32.totalorder %s74, %s75
      %p87 = scmp.eq.s32.totalorder %s23, 2
      %p88 = por %p86, %p87
      %p90 = scmp.ne.s32.totalorder %s75, %s89
      %p91 = scmp.eq.s32.totalorder %s23, 0
      %p92 = por %p90, %p91
      %s94 = sadd.s32 %s93, 1
      %p97 = scmp.eq.s32.totalorder %s17, 2
      %p98 = scmp.ne.s32.totalorder %s93, %s95
      %p99 = scmp.eq.s32.totalorder %s17, 0
      %p100 = por %p98, %p99
      %p101 = scmp.ne.s32.totalorder %s93, %s95
      %p102 = scmp.eq.s32.totalorder %s22, 2
      %p103 = por %p101, %p102
      %p104 = scmp.ne.s32.totalorder %s95, %s96
      %p105 = scmp.eq.s32.totalorder %s22, 0
      %p106 = por %p104, %p105
      %p107 = scmp.ne.s32.totalorder %s95, %s96
      %p108 = scmp.eq.s32.totalorder %s23, 2
      %p109 = por %p107, %p108
      %p111 = scmp.ne.s32.totalorder %s96, %s110
      %p112 = scmp.eq.s32.totalorder %s23, 0
      %p113 = por %p111, %p112
      %s115 = sadd.s32 %s114, 1
      %p118 = scmp.eq.s32.totalorder %s17, 2
      %p119 = scmp.ne.s32.totalorder %s114, %s116
      %p120 = scmp.eq.s32.totalorder %s17, 0
      %p121 = por %p119, %p120
      %p122 = scmp.ne.s32.totalorder %s114, %s116
      %p123 = scmp.eq.s32.totalorder %s22, 2
      %p124 = por %p122, %p123
      %p125 = scmp.ne.s32.totalorder %s116, %s117
      %p126 = scmp.eq.s32.totalorder %s22, 0
      %p127 = por %p125, %p126
      %p128 = scmp.ne.s32.totalorder %s116, %s117
      %p129 = scmp.eq.s32.totalorder %s23, 2
      %p130 = por %p128, %p129
      %p132 = scmp.ne.s32.totalorder %s117, %s131
      %p133 = scmp.eq.s32.totalorder %s23, 0
      %p134 = por %p132, %p133
      %s136 = sadd.s32 %s135, 1
      %p139 = scmp.eq.s32.totalorder %s17, 2
      %p140 = scmp.ne.s32.totalorder %s135, %s137
      %p141 = scmp.eq.s32.totalorder %s17, 0
      %p142 = por %p140, %p141
      %p143 = scmp.ne.s32.totalorder %s135, %s137
      %p144 = scmp.eq.s32.totalorder %s22, 2
      %p145 = por %p143, %p144
      %p146 = scmp.ne.s32.totalorder %s137, %s138
      %p147 = scmp.eq.s32.totalorder %s22, 0
      %p148 = por %p146, %p147
      %p149 = scmp.ne.s32.totalorder %s137, %s138
      %p150 = scmp.eq.s32.totalorder %s23, 2
      %p151 = por %p149, %p150
      %p153 = scmp.ne.s32.totalorder %s138, %s152
      %p154 = scmp.eq.s32.totalorder %s23, 0
      %p155 = por %p153, %p154
      %s157 = sadd.s32 %s156, 1
      %p160 = scmp.eq.s32.totalorder %s17, 2
      %p161 = scmp.ne.s32.totalorder %s156, %s158
      %p162 = scmp.eq.s32.totalorder %s17, 0
      %p163 = por %p161, %p162
      %p164 = scmp.ne.s32.totalorder %s156, %s158
      %p165 = scmp.eq.s32.totalorder %s22, 2
      %p166 = por %p164, %p165
      %p167 = scmp.ne.s32.totalorder %s158, %s159
      %p168 = scmp.eq.s32.totalorder %s22, 0
      %p169 = por %p167, %p168
      %p170 = scmp.ne.s32.totalorder %s158, %s159
      %p171 = scmp.eq.s32.totalorder %s23, 2
      %p172 = por %p170, %p171
      %p174 = scmp.ne.s32.totalorder %s159, %s173
      %p175 = scmp.eq.s32.totalorder %s23, 0
      %p176 = por %p174, %p175
      %s177 = ssub.s32 %s17, %s24
      %p178 = scmp.eq.s32.totalorder %s177, 0
      %s180 = sadd.s32 %s179, 1
      %s181 = scalar_select %p178, %s179, %s180
      %p184 = pneg %p178
      %p185 = scmp.eq.s32.totalorder %s17, 2
      %p186 = por %p184, %p185
      %p187 = scmp.ne.s32.totalorder %s179, %s182
      %p188 = scmp.eq.s32.totalorder %s17, 0
      %p189 = por %p187, %p188
      %p190 = scmp.ne.s32.totalorder %s179, %s182
      %p191 = scmp.eq.s32.totalorder %s22, 2
      %p192 = por %p190, %p191
      %p193 = scmp.ne.s32.totalorder %s182, %s183
      %p194 = scmp.eq.s32.totalorder %s22, 0
      %p195 = por %p193, %p194
      %p196 = scmp.ne.s32.totalorder %s182, %s183
      %p197 = scmp.eq.s32.totalorder %s23, 2
      %p198 = por %p196, %p197
      %p200 = scmp.ne.s32.totalorder %s183, %s199
      %p201 = scmp.eq.s32.totalorder %s23, 0
      %p202 = por %p200, %p201
      %p203 = scmp.le.s32.totalorder 1, %s17
      %p204 = scmp.lt.s32.totalorder %s17, 4
      %p205 = pnand %p203, %p204
      %p206 = pneg %p205
      // Predicated region
      $region9: #{tpu_custom_call.1} parent=5 // pred_check
        _
      $region10: #{tpu_custom_call.1} parent=5 // pred_check_branch
        %208 = sbr.rel (%p205) target = $region12
      $region11: #{tpu_custom_call.1} parent=5 // pred_region
        %s209 = ssub.s32 %s17, 1
        // Predicated region
        $region13: #{tpu_custom_call.1} parent=11 // pred_check
          %p210 = pneg %p64
        $region14: #{tpu_custom_call.1} parent=11 // pred_check_branch
          %212 = sbr.rel (%p210) target = $region16
        $region15: #{tpu_custom_call.1} parent=11 // pred_region
          _
        $region16: #{tpu_custom_call.1} parent=11 // pred_fallthru
          _
        // Predicated region
        $region17: #{tpu_custom_call.1} parent=11 // pred_check
          %p213 = pneg %p85
        $region18: #{tpu_custom_call.1} parent=11 // pred_check_branch
          %215 = sbr.rel (%p213) target = $region20
        $region19: #{tpu_custom_call.1} parent=11 // pred_region
          _
        $region20: #{tpu_custom_call.1} parent=11 // pred_fallthru
          _
        // Predicated region
        $region21: #{tpu_custom_call.1} parent=11 // pred_check
          %p216 = pneg %p106
        $region22: #{tpu_custom_call.1} parent=11 // pred_check_branch
          %218 = sbr.rel (%p216) target = $region24
        $region23: #{tpu_custom_call.1} parent=11 // pred_region
          _
        $region24: #{tpu_custom_call.1} parent=11 // pred_fallthru
          _
        // Predicated region
        $region25: #{tpu_custom_call.1} parent=11 // pred_check
          %p219 = pneg %p127
        $region26: #{tpu_custom_call.1} parent=11 // pred_check_branch
          %221 = sbr.rel (%p219) target = $region28
        $region27: #{tpu_custom_call.1} parent=11 // pred_region
          _
        $region28: #{tpu_custom_call.1} parent=11 // pred_fallthru
          _
        // Predicated region
        $region29: #{tpu_custom_call.1} parent=11 // pred_check
          %p222 = pneg %p148
        $region30: #{tpu_custom_call.1} parent=11 // pred_check_branch
          %224 = sbr.rel (%p222) target = $region32
        $region31: #{tpu_custom_call.1} parent=11 // pred_region
          _
        $region32: #{tpu_custom_call.1} parent=11 // pred_fallthru
          _
        // Predicated region
        $region33: #{tpu_custom_call.1} parent=11 // pred_check
          %p225 = pneg %p169
        $region34: #{tpu_custom_call.1} parent=11 // pred_check_branch
          %227 = sbr.rel (%p225) target = $region36
        $region35: #{tpu_custom_call.1} parent=11 // pred_region
          _
        $region36: #{tpu_custom_call.1} parent=11 // pred_fallthru
          _
      $region12: #{tpu_custom_call.1} parent=5 // pred_fallthru
        _
      %p228 = scmp.lt.s32.totalorder %s17, 3
      // Predicated region
      $region37: #{tpu_custom_call.1} parent=5 // pred_check
        %p229 = pneg %p228
      $region38: #{tpu_custom_call.1} parent=5 // pred_check_branch
        %231 = sbr.rel (%p229) target = $region40
      $region39: #{tpu_custom_call.1} parent=5 // pred_region
        // Predicated region
        $region41: #{tpu_custom_call.1} parent=39 // pred_check
          %p232 = pneg %p37
        $region42: #{tpu_custom_call.1} parent=39 // pred_check_branch
          %234 = sbr.rel (%p232) target = $region44
        $region43: #{tpu_custom_call.1} parent=39 // pred_region
          %s235 = smul.u32 16, %s17
          %s236 = ssub.s32 38, %s235
          %p237 = scmp.lt.s32.totalorder %s236, 16
          %s238 = scalar_select %p237, %s236, 16
          %s239 = smul.u32 128, %s238
          %p240 = scmp.lt.s32.totalorder %s235, 37
          %s241 = scalar_select %p240, %s235, 37
          %s242 = smul.addr %s241, 8
          %s243 = scalar_lea.vmem %s0, %s242
          %s244 = smul.u32 16, %s17
          %s245 = ssub.s32 38, %s244
          %p246 = scmp.lt.s32.totalorder %s245, 16
          %s247 = scalar_select %p246, %s245, 16
          %s248 = smul.u32 128, %s247
        $region44: #{tpu_custom_call.1} parent=39 // pred_fallthru
          _
      $region40: #{tpu_custom_call.1} parent=5 // pred_fallthru
        _
      %p249 = scmp.le.s32.totalorder 1, %s17
      %p250 = scmp.lt.s32.totalorder %s17, 4
      %p251 = pnand %p249, %p250
      %p252 = pneg %p251
      // Predicated region
      $region45: #{tpu_custom_call.1} parent=5 // pred_check
        _
      $region46: #{tpu_custom_call.1} parent=5 // pred_check_branch
        %254 = sbr.rel (%p251) target = $region48
      $region47: #{tpu_custom_call.1} parent=5 // pred_region
        %s255 = ssub.s32 %s17, 1
        %s256 = smul.u32 16, %s22
        %s257 = ssub.s32 38, %s256
        %p258 = scmp.lt.s32.totalorder %s257, 16
        %s259 = scalar_select %p258, %s257, 16
        %s260 = smul.u32 128, %s259
        %p261 = scmp.lt.s32.totalorder %s256, 37
        %s262 = scalar_select %p261, %s256, 37
        %s263 = smul.addr %s262, 8
        %s264 = scalar_lea.vmem %s0, %s263
        %p265 = pneg %p43
        %p266 = pneg %p40
        %p267 = pneg %p64
        %p268 = pneg %p61
        %p269 = pneg %p85
        %p270 = pneg %p82
        %p271 = pneg %p106
        %p272 = pneg %p103
        %p273 = pneg %p127
        %p274 = pneg %p124
        %p275 = pneg %p148
        %p276 = pneg %p145
        %p277 = pneg %p169
        %p278 = pneg %p166
        %p279 = pneg %p195
        %p280 = pneg %p192
        %s281 = sand.u32 %s182, 1
        %s282 = scalar_lea.sflag [#allocation4], %s281
        %s283 = sand.u32 %s182, 1
        %s284 = scalar_lea.vmem [#allocation3], %s283
        %s285 = smul.u32 16, %s22
        %s286 = ssub.s32 38, %s285
        %p287 = scmp.lt.s32.totalorder %s286, 16
        %s288 = scalar_select %p287, %s286, 16
        %s289 = smul.u32 128, %s288
        %p290 = scmp.lt.s32.totalorder %s285, 37
        %s291 = scalar_select %p290, %s285, 37
        %s292 = smul.addr %s291, 8
        %s293 = scalar_lea.vmem %s0, %s292
        %s294 = smul.u32 16, %s22
        %s295 = ssub.s32 38, %s294
        %p296 = scmp.lt.s32.totalorder %s295, 16
        %s297 = scalar_select %p296, %s295, 16
        %s298 = smul.u32 128, %s297
        %v299 = vld [vmem:[%s293] sm:$0xff]
        %v300 = vld [vmem:[%s293 + $0x8] sm:$0xff]
        %v301 = vld [vmem:[%s293 + $0x10] sm:$0xff]
        %v302 = vld [vmem:[%s293 + $0x18] sm:$0xff]
        %v303 = vld [vmem:[%s293 + $0x20] sm:$0xff]
        %v304 = vld [vmem:[%s293 + $0x28] sm:$0xff]
        %v305 = vld [vmem:[%s293 + $0x30] sm:$0xff]
        %v306 = vld [vmem:[%s293 + $0x38] sm:$0xff]
        %v307 = vld [vmem:[%s293 + $0x40] sm:$0xff]
        %v308 = vld [vmem:[%s293 + $0x48] sm:$0xff]
        %v309 = vld [vmem:[%s293 + $0x50] sm:$0xff]
        %v310 = vld [vmem:[%s293 + $0x58] sm:$0xff]
        %v311 = vld [vmem:[%s293 + $0x60] sm:$0xff]
        %v312 = vld [vmem:[%s293 + $0x68] sm:$0xff]
        %v313 = vld [vmem:[%s293 + $0x70] sm:$0xff]
        %v314 = vld [vmem:[%s293 + $0x78] sm:$0xff]
        %v315 = vld [vmem:[%s1] sm:$0xff]
        %v316 = vld [vmem:[%s1 + $0x8] sm:$0xff]
        %v317 = vld [vmem:[%s2] sm:$0x1]
        %v319 = vlaneseq
        %v320 = vshrl.u32 %v319, 7
        %v321 = vsub.s32 0, %v320
        %v322 = vrot.slane %v317, %v321
        %vm324 = vcmask 130048
        %v326 = vsel %vm324, %v299, 0
        %v329 = vsel %vm324, %v300, 0
        %v332 = vsel %vm324, %v301, 0
        %v335 = vsel %vm324, %v302, 0
        %v338 = vsel %vm324, %v303, 0
        %v341 = vsel %vm324, %v304, 0
        %v344 = vsel %vm324, %v305, 0
        %v347 = vsel %vm324, %v306, 0
        %v350 = vsel %vm324, %v307, 0
        %v353 = vsel %vm324, %v308, 0
        %v356 = vsel %vm324, %v309, 0
        %v359 = vsel %vm324, %v310, 0
        %v362 = vsel %vm324, %v311, 0
        %v365 = vsel %vm324, %v312, 0
        %v368 = vsel %vm324, %v313, 0
        %v371 = vsel %vm324, %v314, 0
        %373 = vmatprep.subr.mxu0 0.0
        %374 = vmatpush1.msra.mxu0 0.0
        %375 = vmatprep.subr.mxu0 0.0
        %376 = vmatpush1.msra.mxu0 0.0
        %377 = vmatprep.subr.mxu0 0.0
        %378 = vmatpush1.msra.mxu0 0.0
        %379 = vmatprep.subr.mxu0 0.0
        %380 = vmatpush1.msra.mxu0 0.0
        %381 = vmatprep.subr.mxu0 0.0
        %382 = vmatpush1.msra.mxu0 0.0
        %383 = vmatprep.subr.mxu0 0.0
        %384 = vmatpush1.msra.mxu0 0.0
        %385 = vmatprep.subr.mxu0 0.0
        %386 = vmatpush1.msra.mxu0 0.0
        %387 = vmatprep.subr.mxu0 0.0
        %388 = vmatpush1.msra.mxu0 0.0
        %389 = vmatprep.subr.mxu0 0.0
        %390 = vmatpush1.msra.mxu0 0.0
        %391 = vmatprep.subr.mxu0 0.0
        %392 = vmatpush1.msra.mxu0 0.0
        %393 = vmatprep.subr.mxu0 0.0
        %394 = vmatpush1.msra.mxu0 0.0
        %395 = vmatprep.subr.mxu0 0.0
        %396 = vmatpush1.msra.mxu0 0.0
        %397 = vmatprep.subr.mxu0 0.0
        %398 = vmatpush1.msra.mxu0 0.0
        %399 = vmatprep.subr.mxu0 0.0
        %400 = vmatpush1.msra.mxu0 0.0
        %401 = vmatprep.subr.mxu0 0.0
        %402 = vmatpush1.msra.mxu0 %v316
        %403 = vmatprep.subr.mxu0 0.0
        %404 = vmatpush1.msra.mxu0 %v315
        %405 = vmatprep.subr.mxu0 0.0
        %406 = vmatpush2.msra.mxu0 0.0
        %407 = vmatprep.subr.mxu0 0.0
        %408 = vmatpush2.msra.mxu0 0.0
        %409 = vmatprep.subr.mxu0 0.0
        %410 = vmatpush2.msra.mxu0 0.0
        %411 = vmatprep.subr.mxu0 0.0
        %412 = vmatpush2.msra.mxu0 0.0
        %413 = vmatprep.subr.mxu0 0.0
        %414 = vmatpush2.msra.mxu0 0.0
        %415 = vmatprep.subr.mxu0 0.0
        %416 = vmatpush2.msra.mxu0 0.0
        %417 = vmatprep.subr.mxu0 0.0
        %418 = vmatpush2.msra.mxu0 0.0
        %419 = vmatprep.subr.mxu0 0.0
        %420 = vmatpush2.msra.mxu0 0.0
        %421 = vmatprep.subr.mxu0 0.0
        %422 = vmatpush2.msra.mxu0 0.0
        %423 = vmatprep.subr.mxu0 0.0
        %424 = vmatpush2.msra.mxu0 0.0
        %425 = vmatprep.subr.mxu0 0.0
        %426 = vmatpush2.msra.mxu0 0.0
        %427 = vmatprep.subr.mxu0 0.0
        %428 = vmatpush2.msra.mxu0 0.0
        %429 = vmatprep.subr.mxu0 0.0
        %430 = vmatpush2.msra.mxu0 0.0
        %431 = vmatprep.subr.mxu0 0.0
        %432 = vmatpush2.msra.mxu0 0.0
        %433 = vmatprep.subr.mxu0 0.0
        %434 = vmatpush2.msra.mxu0 0.0
        %435 = vmatprep.subr.mxu0 0.0
        %436 = vmatpush2.msra.mxu0 0.0
        %437 = vmatprep.mubr.f32.mxu0 0.0
        %438 = vmatmul.mubr.f32.gmra.mxu0 %v326
        %v439 = vpop.f32.mrf.mxu0
        %v440 = vadd.f32 %v322, %v439
        %v441 = vpop.f32.mrf.mxu0
        %442 = vmatprep.mubr.f32.mxu0 0.0
        %443 = vmatmul.mubr.f32.gmra.mxu0 %v329
        %v444 = vpop.f32.mrf.mxu0
        %v445 = vadd.f32 %v322, %v444
        %v446 = vpop.f32.mrf.mxu0
        %447 = vmatprep.mubr.f32.mxu0 0.0
        %448 = vmatmul.mubr.f32.gmra.mxu0 %v332
        %v449 = vpop.f32.mrf.mxu0
        %v450 = vadd.f32 %v322, %v449
        %v451 = vpop.f32.mrf.mxu0
        %452 = vmatprep.mubr.f32.mxu0 0.0
        %453 = vmatmul.mubr.f32.gmra.mxu0 %v335
        %v454 = vpop.f32.mrf.mxu0
        %v455 = vadd.f32 %v322, %v454
        %v456 = vpop.f32.mrf.mxu0
        %457 = vmatprep.mubr.f32.mxu0 0.0
        %458 = vmatmul.mubr.f32.gmra.mxu0 %v338
        %v459 = vpop.f32.mrf.mxu0
        %v460 = vadd.f32 %v322, %v459
        %v461 = vpop.f32.mrf.mxu0
        %462 = vmatprep.mubr.f32.mxu0 0.0
        %463 = vmatmul.mubr.f32.gmra.mxu0 %v341
        %v464 = vpop.f32.mrf.mxu0
        %v465 = vadd.f32 %v322, %v464
        %v466 = vpop.f32.mrf.mxu0
        %467 = vmatprep.mubr.f32.mxu0 0.0
        %468 = vmatmul.mubr.f32.gmra.mxu0 %v344
        %v469 = vpop.f32.mrf.mxu0
        %v470 = vadd.f32 %v322, %v469
        %v471 = vpop.f32.mrf.mxu0
        %472 = vmatprep.mubr.f32.mxu0 0.0
        %473 = vmatmul.mubr.f32.gmra.mxu0 %v347
        %v474 = vpop.f32.mrf.mxu0
        %v475 = vadd.f32 %v322, %v474
        %v476 = vpop.f32.mrf.mxu0
        %477 = vmatprep.mubr.f32.mxu0 0.0
        %478 = vmatmul.mubr.f32.gmra.mxu0 %v350
        %v479 = vpop.f32.mrf.mxu0
        %v480 = vadd.f32 %v322, %v479
        %v481 = vpop.f32.mrf.mxu0
        %482 = vmatprep.mubr.f32.mxu0 0.0
        %483 = vmatmul.mubr.f32.gmra.mxu0 %v353
        %v484 = vpop.f32.mrf.mxu0
        %v485 = vadd.f32 %v322, %v484
        %v486 = vpop.f32.mrf.mxu0
        %487 = vmatprep.mubr.f32.mxu0 0.0
        %488 = vmatmul.mubr.f32.gmra.mxu0 %v356
        %v489 = vpop.f32.mrf.mxu0
        %v490 = vadd.f32 %v322, %v489
        %v491 = vpop.f32.mrf.mxu0
        %492 = vmatprep.mubr.f32.mxu0 0.0
        %493 = vmatmul.mubr.f32.gmra.mxu0 %v359
        %v494 = vpop.f32.mrf.mxu0
        %v495 = vadd.f32 %v322, %v494
        %v496 = vpop.f32.mrf.mxu0
        %497 = vmatprep.mubr.f32.mxu0 0.0
        %498 = vmatmul.mubr.f32.gmra.mxu0 %v362
        %v499 = vpop.f32.mrf.mxu0
        %v500 = vadd.f32 %v322, %v499
        %v501 = vpop.f32.mrf.mxu0
        %502 = vmatprep.mubr.f32.mxu0 0.0
        %503 = vmatmul.mubr.f32.gmra.mxu0 %v365
        %v504 = vpop.f32.mrf.mxu0
        %v505 = vadd.f32 %v322, %v504
        %v506 = vpop.f32.mrf.mxu0
        %507 = vmatprep.mubr.f32.mxu0 0.0
        %508 = vmatmul.mubr.f32.gmra.mxu0 %v368
        %v509 = vpop.f32.mrf.mxu0
        %v510 = vadd.f32 %v322, %v509
        %v511 = vpop.f32.mrf.mxu0
        %512 = vmatprep.mubr.f32.mxu0 0.0
        %513 = vmatmul.mubr.f32.gmra.mxu0 %v371
        %v514 = vpop.f32.mrf.mxu0
        %v515 = vadd.f32 %v322, %v514
        %v516 = vpop.f32.mrf.mxu0
        %517 = vdwg.mxu0
        %v518 = vmax.f32 %v440, 0.0
        %v519 = vmax.f32 %v445, 0.0
        %v520 = vmax.f32 %v450, 0.0
        %v521 = vmax.f32 %v455, 0.0
        %v522 = vmax.f32 %v460, 0.0
        %v523 = vmax.f32 %v465, 0.0
        %v524 = vmax.f32 %v470, 0.0
        %v525 = vmax.f32 %v475, 0.0
        %v526 = vmax.f32 %v480, 0.0
        %v527 = vmax.f32 %v485, 0.0
        %v528 = vmax.f32 %v490, 0.0
        %v529 = vmax.f32 %v495, 0.0
        %v530 = vmax.f32 %v500, 0.0
        %v531 = vmax.f32 %v505, 0.0
        %v532 = vmax.f32 %v510, 0.0
        %v533 = vmax.f32 %v515, 0.0
        %v534 = vld [vmem:[%s3] sm:$0xff]
        %v535 = vld [vmem:[%s3 + $0x8] sm:$0xff]
        %v536 = vld [vmem:[%s3 + $0x10] sm:$0xff]
        %v537 = vld [vmem:[%s3 + $0x18] sm:$0xff]
        %v538 = vld [vmem:[%s4] sm:$0x1]
        %v540 = vlaneseq
        %v541 = vshrl.u32 %v540, 7
        %v542 = vsub.s32 0, %v541
        %v543 = vrot.slane %v538, %v542
        %vm545 = vcmask 261120
        %v547 = vsel %vm545, %v518, 0
        %v550 = vsel %vm545, %v519, 0
        %v553 = vsel %vm545, %v520, 0
        %v556 = vsel %vm545, %v521, 0
        %v559 = vsel %vm545, %v522, 0
        %v562 = vsel %vm545, %v523, 0
        %v565 = vsel %vm545, %v524, 0
        %v568 = vsel %vm545, %v525, 0
        %v571 = vsel %vm545, %v526, 0
        %v574 = vsel %vm545, %v527, 0
        %v577 = vsel %vm545, %v528, 0
        %v580 = vsel %vm545, %v529, 0
        %v583 = vsel %vm545, %v530, 0
        %v586 = vsel %vm545, %v531, 0
        %v589 = vsel %vm545, %v532, 0
        %v592 = vsel %vm545, %v533, 0
        %594 = vmatprep.subr.mxu0 0.0
        %595 = vmatpush1.msra.mxu0 0.0
        %596 = vmatprep.subr.mxu0 0.0
        %597 = vmatpush1.msra.mxu0 0.0
        %598 = vmatprep.subr.mxu0 0.0
        %599 = vmatpush1.msra.mxu0 0.0
        %600 = vmatprep.subr.mxu0 0.0
        %601 = vmatpush1.msra.mxu0 0.0
        %602 = vmatprep.subr.mxu0 0.0
        %603 = vmatpush1.msra.mxu0 0.0
        %604 = vmatprep.subr.mxu0 0.0
        %605 = vmatpush1.msra.mxu0 0.0
        %606 = vmatprep.subr.mxu0 0.0
        %607 = vmatpush1.msra.mxu0 0.0
        %608 = vmatprep.subr.mxu0 0.0
        %609 = vmatpush1.msra.mxu0 0.0
        %610 = vmatprep.subr.mxu0 0.0
        %611 = vmatpush1.msra.mxu0 0.0
        %612 = vmatprep.subr.mxu0 0.0
        %613 = vmatpush1.msra.mxu0 0.0
        %614 = vmatprep.subr.mxu0 0.0
        %615 = vmatpush1.msra.mxu0 0.0
        %616 = vmatprep.subr.mxu0 0.0
        %617 = vmatpush1.msra.mxu0 0.0
        %618 = vmatprep.subr.mxu0 0.0
        %619 = vmatpush1.msra.mxu0 %v537
        %620 = vmatprep.subr.mxu0 0.0
        %621 = vmatpush1.msra.mxu0 %v536
        %622 = vmatprep.subr.mxu0 0.0
        %623 = vmatpush1.msra.mxu0 %v535
        %624 = vmatprep.subr.mxu0 0.0
        %625 = vmatpush1.msra.mxu0 %v534
        %626 = vmatprep.subr.mxu0 0.0
        %627 = vmatpush2.msra.mxu0 0.0
        %628 = vmatprep.subr.mxu0 0.0
        %629 = vmatpush2.msra.mxu0 0.0
        %630 = vmatprep.subr.mxu0 0.0
        %631 = vmatpush2.msra.mxu0 0.0
        %632 = vmatprep.subr.mxu0 0.0
        %633 = vmatpush2.msra.mxu0 0.0
        %634 = vmatprep.subr.mxu0 0.0
        %635 = vmatpush2.msra.mxu0 0.0
        %636 = vmatprep.subr.mxu0 0.0
        %637 = vmatpush2.msra.mxu0 0.0
        %638 = vmatprep.subr.mxu0 0.0
        %639 = vmatpush2.msra.mxu0 0.0
        %640 = vmatprep.subr.mxu0 0.0
        %641 = vmatpush2.msra.mxu0 0.0
        %642 = vmatprep.subr.mxu0 0.0
        %643 = vmatpush2.msra.mxu0 0.0
        %644 = vmatprep.subr.mxu0 0.0
        %645 = vmatpush2.msra.mxu0 0.0
        %646 = vmatprep.subr.mxu0 0.0
        %647 = vmatpush2.msra.mxu0 0.0
        %648 = vmatprep.subr.mxu0 0.0
        %649 = vmatpush2.msra.mxu0 0.0
        %650 = vmatprep.subr.mxu0 0.0
        %651 = vmatpush2.msra.mxu0 0.0
        %652 = vmatprep.subr.mxu0 0.0
        %653 = vmatpush2.msra.mxu0 0.0
        %654 = vmatprep.subr.mxu0 0.0
        %655 = vmatpush2.msra.mxu0 0.0
        %656 = vmatprep.subr.mxu0 0.0
        %657 = vmatpush2.msra.mxu0 0.0
        %658 = vmatprep.mubr.f32.mxu0 0.0
        %659 = vmatmul.mubr.f32.gmra.mxu0 %v547
        %v660 = vpop.f32.mrf.mxu0
        %v661 = vadd.f32 %v543, %v660
        %v662 = vpop.f32.mrf.mxu0
        %663 = vmatprep.mubr.f32.mxu0 0.0
        %664 = vmatmul.mubr.f32.gmra.mxu0 %v550
        %v665 = vpop.f32.mrf.mxu0
        %v666 = vadd.f32 %v543, %v665
        %v667 = vpop.f32.mrf.mxu0
        %668 = vmatprep.mubr.f32.mxu0 0.0
        %669 = vmatmul.mubr.f32.gmra.mxu0 %v553
        %v670 = vpop.f32.mrf.mxu0
        %v671 = vadd.f32 %v543, %v670
        %v672 = vpop.f32.mrf.mxu0
        %673 = vmatprep.mubr.f32.mxu0 0.0
        %674 = vmatmul.mubr.f32.gmra.mxu0 %v556
        %v675 = vpop.f32.mrf.mxu0
        %v676 = vadd.f32 %v543, %v675
        %v677 = vpop.f32.mrf.mxu0
        %678 = vmatprep.mubr.f32.mxu0 0.0
        %679 = vmatmul.mubr.f32.gmra.mxu0 %v559
        %v680 = vpop.f32.mrf.mxu0
        %v681 = vadd.f32 %v543, %v680
        %v682 = vpop.f32.mrf.mxu0
        %683 = vmatprep.mubr.f32.mxu0 0.0
        %684 = vmatmul.mubr.f32.gmra.mxu0 %v562
        %v685 = vpop.f32.mrf.mxu0
        %v686 = vadd.f32 %v543, %v685
        %v687 = vpop.f32.mrf.mxu0
        %688 = vmatprep.mubr.f32.mxu0 0.0
        %689 = vmatmul.mubr.f32.gmra.mxu0 %v565
        %v690 = vpop.f32.mrf.mxu0
        %v691 = vadd.f32 %v543, %v690
        %v692 = vpop.f32.mrf.mxu0
        %693 = vmatprep.mubr.f32.mxu0 0.0
        %694 = vmatmul.mubr.f32.gmra.mxu0 %v568
        %v695 = vpop.f32.mrf.mxu0
        %v696 = vadd.f32 %v543, %v695
        %v697 = vpop.f32.mrf.mxu0
        %698 = vmatprep.mubr.f32.mxu0 0.0
        %699 = vmatmul.mubr.f32.gmra.mxu0 %v571
        %v700 = vpop.f32.mrf.mxu0
        %v701 = vadd.f32 %v543, %v700
        %v702 = vpop.f32.mrf.mxu0
        %703 = vmatprep.mubr.f32.mxu0 0.0
        %704 = vmatmul.mubr.f32.gmra.mxu0 %v574
        %v705 = vpop.f32.mrf.mxu0
        %v706 = vadd.f32 %v543, %v705
        %v707 = vpop.f32.mrf.mxu0
        %708 = vmatprep.mubr.f32.mxu0 0.0
        %709 = vmatmul.mubr.f32.gmra.mxu0 %v577
        %v710 = vpop.f32.mrf.mxu0
        %v711 = vadd.f32 %v543, %v710
        %v712 = vpop.f32.mrf.mxu0
        %713 = vmatprep.mubr.f32.mxu0 0.0
        %714 = vmatmul.mubr.f32.gmra.mxu0 %v580
        %v715 = vpop.f32.mrf.mxu0
        %v716 = vadd.f32 %v543, %v715
        %v717 = vpop.f32.mrf.mxu0
        %718 = vmatprep.mubr.f32.mxu0 0.0
        %719 = vmatmul.mubr.f32.gmra.mxu0 %v583
        %v720 = vpop.f32.mrf.mxu0
        %v721 = vadd.f32 %v543, %v720
        %v722 = vpop.f32.mrf.mxu0
        %723 = vmatprep.mubr.f32.mxu0 0.0
        %724 = vmatmul.mubr.f32.gmra.mxu0 %v586
        %v725 = vpop.f32.mrf.mxu0
        %v726 = vadd.f32 %v543, %v725
        %v727 = vpop.f32.mrf.mxu0
        %728 = vmatprep.mubr.f32.mxu0 0.0
        %729 = vmatmul.mubr.f32.gmra.mxu0 %v589
        %v730 = vpop.f32.mrf.mxu0
        %v731 = vadd.f32 %v543, %v730
        %v732 = vpop.f32.mrf.mxu0
        %733 = vmatprep.mubr.f32.mxu0 0.0
        %734 = vmatmul.mubr.f32.gmra.mxu0 %v592
        %v735 = vpop.f32.mrf.mxu0
        %v736 = vadd.f32 %v543, %v735
        %v737 = vpop.f32.mrf.mxu0
        %738 = vdwg.mxu0
        %v739 = vmax.f32 %v661, 0.0
        %v740 = vmax.f32 %v666, 0.0
        %v741 = vmax.f32 %v671, 0.0
        %v742 = vmax.f32 %v676, 0.0
        %v743 = vmax.f32 %v681, 0.0
        %v744 = vmax.f32 %v686, 0.0
        %v745 = vmax.f32 %v691, 0.0
        %v746 = vmax.f32 %v696, 0.0
        %v747 = vmax.f32 %v701, 0.0
        %v748 = vmax.f32 %v706, 0.0
        %v749 = vmax.f32 %v711, 0.0
        %v750 = vmax.f32 %v716, 0.0
        %v751 = vmax.f32 %v721, 0.0
        %v752 = vmax.f32 %v726, 0.0
        %v753 = vmax.f32 %v731, 0.0
        %v754 = vmax.f32 %v736, 0.0
        %755 = vxpose.xlu0.b32.start [1/16] %v739, 128
        %756 = vxpose.xlu0.b32.cont [2/16] %v740, 128
        %757 = vxpose.xlu0.b32.cont [3/16] %v741, 128
        %758 = vxpose.xlu0.b32.cont [4/16] %v742, 128
        %759 = vxpose.xlu0.b32.cont [5/16] %v743, 128
        %760 = vxpose.xlu0.b32.cont [6/16] %v744, 128
        %761 = vxpose.xlu0.b32.cont [7/16] %v745, 128
        %762 = vxpose.xlu0.b32.cont [8/16] %v746, 128
        %763 = vxpose.xlu0.b32.cont [9/16] %v747, 128
        %764 = vxpose.xlu0.b32.cont [10/16] %v748, 128
        %765 = vxpose.xlu0.b32.cont [11/16] %v749, 128
        %766 = vxpose.xlu0.b32.cont [12/16] %v750, 128
        %767 = vxpose.xlu0.b32.cont [13/16] %v751, 128
        %768 = vxpose.xlu0.b32.cont [14/16] %v752, 128
        %769 = vxpose.xlu0.b32.cont [15/16] %v753, 128
        %770 = vxpose.xlu0.b32.end [16/16] %v754, 128
        %v771 = vpop.trf.xlu0
        %v772 = vpop.trf.xlu0
        %v773 = vpop.trf.xlu0
        %v774 = vpop.trf.xlu0
        %v775 = vpop.trf.xlu0
        %v776 = vpop.trf.xlu0
        %v777 = vpop.trf.xlu0
        %v778 = vpop.trf.xlu0
        %v779 = vpop.trf.xlu0
        %v780 = vpop.trf.xlu0
        %v781 = vpop.trf.xlu0
        %v782 = vpop.trf.xlu0
        %v783 = vpop.trf.xlu0
        %v784 = vpop.trf.xlu0
        %v785 = vpop.trf.xlu0
        %v786 = vpop.trf.xlu0
        %v787 = vld [vmem:[%s5] sm:$0xff]
        %v788 = vld [vmem:[%s5 + $0x8] sm:$0xff]
        %v789 = vld [vmem:[%s5 + $0x10] sm:$0xff]
        %v790 = vld [vmem:[%s5 + $0x18] sm:$0xff]
        %792 = vset.pattern.permute.xlu0 0
        %793 = vperm.xlu0 %792, %v787
        %v794 = vpop.permute.xlu0 %793
        %797 = vset.pattern.permute.xlu0 0
        %798 = vperm.xlu0 %797, %v788
        %v799 = vpop.permute.xlu0 %798
        %802 = vset.pattern.permute.xlu0 0
        %803 = vperm.xlu0 %802, %v789
        %v804 = vpop.permute.xlu0 %803
        %807 = vset.pattern.permute.xlu0 0
        %808 = vperm.xlu0 %807, %v790
        %v809 = vpop.permute.xlu0 %808
        %v811 = vmul.f32 %v771, %v794
        %v812 = vmul.f32 %v772, %v799
        %v813 = vmul.f32 %v773, %v804
        %v814 = vmul.f32 %v774, %v809
        %v815 = vadd.f32 %v811, %v812
        %v816 = vadd.f32 %v815, %v813
        %v817 = vadd.f32 %v816, %v814
        %v818 = vrot.slane %v817, 4
        %v819 = vadd.f32 %v817, %v818
        %v820 = vrot.slane %v819, 2
        %v821 = vadd.f32 %v819, %v820
        %v822 = vrot.slane %v821, 1
        %v823 = vadd.f32 %v821, %v822
        %s824 = sld [smem:[#allocation2]]
        %v825 = vstv %s824
        %v826 = vadd.f32 %v823, %v825
        %827 = vst [vmem:[%s284] sm:$0x1] %v826
        %s828 = sand.u32 %s182, 1
        %s829 = scalar_lea.sflag [#allocation4], %s828
        %s830 = sand.u32 %s182, 1
        %s831 = scalar_lea.vmem [#allocation3], %s830
        // Predicated region
        $region49: #{tpu_custom_call.1} parent=47 // pred_check
          %p832 = pneg %p192
        $region50: #{tpu_custom_call.1} parent=47 // pred_check_branch
          %834 = sbr.rel (%p832) target = $region52
        $region51: #{tpu_custom_call.1} parent=47 // pred_region
          %s836 = ssub.s32 16, 16
          %837 = vsyncadd %s829, %s836
          %s838 = smul.addr %s22, 16
          %s839 = scalar_lea.hbm %s7, %s838
          %s841 = sshll.u32 %s831, 4
          %s842 = int_to_ptr.vmem [resolvable:$true] %s841
          %844 = dma.vmem_to_hbm [thread:$0]  %s842, 16, %s839, %s829
        $region52: #{tpu_custom_call.1} parent=47 // pred_fallthru
          _
      $region48: #{tpu_custom_call.1} parent=5 // pred_fallthru
        _
      %p845 = scmp.le.s32.totalorder 2, %s17
      // Predicated region
      $region53: #{tpu_custom_call.1} parent=5 // pred_check
        %p846 = pneg %p845
      $region54: #{tpu_custom_call.1} parent=5 // pred_check_branch
        %848 = sbr.rel (%p846) target = $region56
      $region55: #{tpu_custom_call.1} parent=5 // pred_region
        %s849 = ssub.s32 %s17, 2
        // Predicated region
        $region57: #{tpu_custom_call.1} parent=55 // pred_check
          %p850 = pneg %p198
        $region58: #{tpu_custom_call.1} parent=55 // pred_check_branch
          %852 = sbr.rel (%p850) target = $region60
        $region59: #{tpu_custom_call.1} parent=55 // pred_region
          %s853 = sand.u32 %s183, 1
          %s854 = scalar_lea.sflag [#allocation4], %s853
          %s855 = sand.u32 %s183, 1
          %s856 = scalar_lea.vmem [#allocation3], %s855
          %857 = dma.done %s854, 16
        $region60: #{tpu_custom_call.1} parent=55 // pred_fallthru
          _
      $region56: #{tpu_custom_call.1} parent=5 // pred_fallthru
        _
    $region6: #{tpu_custom_call.1} parent=1 // loop_footer
      %s21 = sadd.s32 1, %s17
    $region7: #{tpu_custom_call.1} parent=1 // loop_footer_branch
      %16 = sbr.rel target = $region3
    $region8: #{tpu_custom_call.1} parent=1 // loop_exit
      _
    %858 = vsyncpa [#allocation4], 1
    %s859 = scalar_lea.sflag [#allocation4], 1
    %860 = vsyncpa %s859, 1

</llo_original>
